<compile_context>
chip_gen: v5e
topology: v5e:2x2
jax: 0.10.0
libtpu: 0.0.40
codegen_flags: <defaults>
</compile_context>

<pallas_src>
import math

import jax
import jax.numpy as jnp
from jax.experimental import pallas as pl
from jax.experimental.pallas import tpu as pltpu


def _cdiv(a, b):
    return -(-a // b)


def _round_up(x, m):
    return _cdiv(x, m) * m


# -----------------------------------------------------------------------------
# Kernels
# -----------------------------------------------------------------------------
def _linear_kernel_single_k(x_ref, w_ref, b_ref, o_ref):
    # Grid = (M blocks, N blocks). Whole reduction dim in one MXU pass:
    # no accumulator scratch, no extra VMEM round trip.
    acc = jnp.dot(x_ref[...], w_ref[...], preferred_element_type=jnp.float32)
    o_ref[...] = (acc + b_ref[...].astype(jnp.float32)).astype(o_ref.dtype)


def _make_linear_kernel_multi_k(tk, k_valid_last):
    """Multi-K kernel. If the last K tile is partial (k_valid_last != tk),
    the x tile is masked in-kernel so no wrapper-side activation padding is
    needed (the weight is zero-padded along K by the wrapper)."""
    mask_needed = k_valid_last != tk

    def kernel(x_ref, w_ref, b_ref, o_ref, acc_ref):
        k = pl.program_id(2)
        nk = pl.num_programs(2)

        x = x_ref[...]
        if mask_needed:
            # Only the last K block has invalid trailing columns; cheap VPU
            # compare+select that hides under the MXU.
            col = jax.lax.broadcasted_iota(jnp.int32, x.shape, 1)
            valid = jnp.where(k == nk - 1, k_valid_last, tk)
            x = jnp.where(col < valid, x, jnp.zeros_like(x))

        prod = jnp.dot(x, w_ref[...], preferred_element_type=jnp.float32)

        @pl.when(k == 0)
        def _():
            acc_ref[...] = prod

        @pl.when(k > 0)
        def _():
            acc_ref[...] += prod

        @pl.when(k == nk - 1)
        def _():
            o_ref[...] = (acc_ref[...] + b_ref[...].astype(jnp.float32)).astype(
                o_ref.dtype
            )

    return kernel


# -----------------------------------------------------------------------------
# Wrapper
# -----------------------------------------------------------------------------
def linear_layer(
    x,
    weight,
    bias=None,
    *,
    tm=512,
    tn=512,
    tk_max=2048,
    compute_dtype=jnp.bfloat16,
    out_dtype=None,
    vmem_budget_bytes=48 << 20,
):
    """Applies y = x @ weight + bias over the last dim of x.

    x:      (..., dim_in)
    weight: (dim_in, dim_out)   -- transpose of PyTorch nn.Linear weight
    bias:   (dim_out,) or None
    compute_dtype: dtype both x and weight are cast to for the MXU
        (default bf16; pass jnp.float32 or None to keep full precision).
        Accumulation is always f32.
    out_dtype: output dtype (defaults to x.dtype).
    """
    dim_in, dim_out = weight.shape
    assert x.shape[-1] == dim_in, (x.shape, dim_in)
    orig_shape = x.shape
    out_dtype = x.dtype if out_dtype is None else out_dtype
    if compute_dtype is None:
        compute_dtype = x.dtype

    # Explicit dtypes: no silent mixed-precision promotion inside the dot.
    x2d = x.reshape(-1, dim_in).astype(compute_dtype)
    w = weight.astype(compute_dtype)
    if bias is None:
        bias = jnp.zeros((dim_out,), jnp.float32)
    b2d = bias.reshape(1, dim_out)

    M = x2d.shape[0]
    comp_size = jnp.dtype(compute_dtype).itemsize
    out_size = jnp.dtype(out_dtype).itemsize
    sublane = 8 * max(1, 4 // comp_size)  # 8 for f32, 16 for bf16, 32 for int8

    # --- K tiling ------------------------------------------------------------
    if dim_in <= tk_max:
        nk, tk_eff, k_pad = 1, dim_in, dim_in
    else:
        # Balanced K tiles: padding stays well under one MXU tile.
        nk = _cdiv(dim_in, tk_max)
        tk_eff = _round_up(_cdiv(dim_in, nk), 128)
        k_pad = nk * tk_eff
    k_valid_last = dim_in - (nk - 1) * tk_eff

    if k_pad != dim_in:
        # Zero-pad only the (small, parameter-sized) weight along K; the large
        # activation is never padded (last x K-tile is masked in-kernel).
        w = jnp.pad(w, ((0, k_pad - dim_in), (0, 0)))

    # --- M tiling (no activation padding; Pallas only writes back in-bounds
    #     rows of partial edge blocks; rows are independent) -------------------
    tm_eff = min(tm, _round_up(M, sublane))

    # --- N tiling (no output padding and no post-kernel slice) ---------------
    tn_eff = min(tn, _round_up(dim_out, 128))
    if tn_eff > dim_out:
        tn_eff = dim_out  # single full-dim block; avoids wasted MXU columns

    # Keep >= 2 parallel blocks when M permits so v7x's 2 TensorCores both work.
    if _cdiv(M, tm_eff) * _cdiv(dim_out, tn_eff) < 2 and M >= 2 * sublane:
        tm_eff = max(sublane, _round_up(_cdiv(M, 2), sublane))

    # --- VMEM budgeting (accurate per-array dtypes) ---------------------------
    def _vmem_need(tm_, tn_, tk_):
        need = 2 * (tm_ * tk_ + tk_ * tn_ + tn_) * comp_size  # dbl-buffered inputs
        need += 2 * tm_ * tn_ * out_size                       # dbl-buffered output
        if nk > 1:
            need += tm_ * tn_ * 4                              # f32 acc scratch
        return need

    while _vmem_need(tm_eff, tn_eff, tk_eff) > vmem_budget_bytes:
        if tm_eff > max(128, sublane):
            tm_eff = _round_up(tm_eff // 2, sublane)
        elif tn_eff > 128:
            tn_eff = _round_up(tn_eff // 2, 128)
        else:
            break  # as small as reasonable; let the compiler have the final say

    need = _vmem_need(tm_eff, tn_eff, tk_eff)
    # Request what is needed (+ headroom), capped below v7x's 64 MiB physical.
    vmem_limit = int(min(56 << 20, max(32 << 20, need + (4 << 20))))

    cost = pl.CostEstimate(
        flops=2 * M * dim_in * dim_out,
        transcendentals=0,
        bytes_accessed=(M * dim_in + dim_in * dim_out) * comp_size
        + dim_out * jnp.dtype(bias.dtype).itemsize
        + M * dim_out * out_size,
    )

    if nk == 1:
        grid = (_cdiv(M, tm_eff), _cdiv(dim_out, tn_eff))
        out = pl.pallas_call(
            _linear_kernel_single_k,
            out_shape=jax.ShapeDtypeStruct((M, dim_out), out_dtype),
            grid_spec=pltpu.PrefetchScalarGridSpec(
                num_scalar_prefetch=0,
                grid=grid,
                in_specs=[
                    pl.BlockSpec((tm_eff, tk_eff), lambda i, j: (i, 0)),
                    pl.BlockSpec((tk_eff, tn_eff), lambda i, j: (0, j)),
                    pl.BlockSpec((1, tn_eff), lambda i, j: (0, j)),
                ],
                out_specs=pl.BlockSpec((tm_eff, tn_eff), lambda i, j: (i, j)),
            ),
            compiler_params=pltpu.CompilerParams(
                dimension_semantics=("parallel", "parallel"),
                vmem_limit_bytes=vmem_limit,
            ),
            cost_estimate=cost,
        )(x2d, w, b2d)
    else:
        grid = (_cdiv(M, tm_eff), _cdiv(dim_out, tn_eff), nk)
        kernel = _make_linear_kernel_multi_k(tk_eff, k_valid_last)
        out = pl.pallas_call(
            kernel,
            out_shape=jax.ShapeDtypeStruct((M, dim_out), out_dtype),
            grid_spec=pltpu.PrefetchScalarGridSpec(
                num_scalar_prefetch=0,
                grid=grid,
                in_specs=[
                    pl.BlockSpec((tm_eff, tk_eff), lambda i, j, k: (i, k)),
                    pl.BlockSpec((tk_eff, tn_eff), lambda i, j, k: (k, j)),
                    pl.BlockSpec((1, tn_eff), lambda i, j, k: (0, j)),
                ],
                out_specs=pl.BlockSpec((tm_eff, tn_eff), lambda i, j, k: (i, j)),
                scratch_shapes=[pltpu.VMEM((tm_eff, tn_eff), jnp.float32)],
            ),
            compiler_params=pltpu.CompilerParams(
                dimension_semantics=("parallel", "parallel", "arbitrary"),
                vmem_limit_bytes=vmem_limit,
            ),
            cost_estimate=cost,
        )(x2d, w, b2d)

    return out.reshape(*orig_shape[:-1], dim_out)


def init_linear_params(key, dim_in, dim_out, weight_init_style="xavier",
                       proj_bias=True, dtype=jnp.float32):
    """Deterministic parameter init matching LinearLayer.init_weights_sp."""
    if weight_init_style == "zero":
        w = jnp.zeros((dim_in, dim_out), dtype)
    elif weight_init_style == "xavier":
        # xavier_uniform_: U(-a, a), a = sqrt(6 / (fan_in + fan_out))
        bound = math.sqrt(6.0 / (dim_in + dim_out))
        w = jax.random.uniform(key, (dim_in, dim_out), dtype,
                               minval=-bound, maxval=bound)
    elif weight_init_style == "trunc_normal":
        w = 0.02 * jax.random.truncated_normal(key, -2.0, 2.0,
                                               (dim_in, dim_out), dtype)
    else:
        raise ValueError(f"Unsupported weight init: {weight_init_style}")
    b = jnp.zeros((dim_out,), dtype) if proj_bias else None
    return w, b


if __name__ == "__main__":
    key = jax.random.PRNGKey(0)
    k_x, k_w, k_x2, k_w2 = jax.random.split(key, 4)

    # Small shapes consistent with the module: batch=2, seq=8, dim_in=32, dim(out)=64
    B, S, DIM_IN, DIM_OUT = 2, 8, 32, 64
    x = jax.random.normal(k_x, (B, S, DIM_IN), jnp.float32)
    weight, bias = init_linear_params(k_w, DIM_IN, DIM_OUT,
                                      weight_init_style="xavier", proj_bias=True)

    # data_dict-style read/write glue (plain Python)
    # TODO(synk): get_autocast_context / dtype_override has no Pallas equivalent;
    #             precision is controlled via compute_dtype / out_dtype instead.
    data_dict = {"tokens": x}
    data_dict["tokens_proj"] = linear_layer(data_dict["tokens"], weight, bias)
    y = jax.block_until_ready(data_dict["tokens_proj"])

    y_ref = x @ weight + bias
    assert y.shape == (B, S, DIM_OUT)
    assert y.dtype == x.dtype
    # Default path casts to bf16 on the MXU -> looser tolerance vs f32 reference.
    assert jnp.allclose(y, y_ref, atol=1e-1, rtol=5e-2)

    # Strict f32 compute path (single-K fast path, no accumulator scratch).
    y32 = jax.block_until_ready(
        linear_layer(x, weight, bias, compute_dtype=jnp.float32))
    assert jnp.allclose(y32, y_ref, atol=1e-5, rtol=1e-5)

    # Multi-K path with K-remainder masking (dim_in=160 forced over tk_max=128).
    DIM_IN2 = 160
    x2 = jax.random.normal(k_x2, (B, S, DIM_IN2), jnp.float32)
    w2, b2 = init_linear_params(k_w2, DIM_IN2, DIM_OUT,
                                weight_init_style="xavier", proj_bias=True)
    y2 = jax.block_until_ready(
        linear_layer(x2, w2, b2, tk_max=128, compute_dtype=jnp.float32))
    y2_ref = x2 @ w2 + b2
    assert jnp.allclose(y2, y2_ref, atol=2e-3, rtol=2e-3)

    print("KERNEL_OK")
</pallas_src>

<mosaic_0001>
module attributes {stable_mosaic.version = 11 : i64} {
  func.func @_linear_kernel_single_k(%arg0: i32, %arg1: i32, %arg2: memref<16x32xbf16, #tpu.memory_space<vmem>>, %arg3: memref<32x64xbf16, #tpu.memory_space<vmem>>, %arg4: memref<1x64xf32, #tpu.memory_space<vmem>>, %arg5: memref<16x64xf32, #tpu.memory_space<vmem>>) attributes {dimension_semantics = [#tpu.dimension_semantics<parallel>, #tpu.dimension_semantics<parallel>], iteration_bounds = array<i64: 1, 1>, scalar_prefetch = 0 : i64, scratch_operands = 0 : i64, tpu.core_type = #tpu.core_type<tc>, window_params = [{transform_indices = @transform_0, window_bounds = array<i64: 16, 32>}, {transform_indices = @transform_1, window_bounds = array<i64: 32, 64>}, {transform_indices = @transform_2, window_bounds = array<i64: 1, 64>}, {transform_indices = @transform_3, window_bounds = array<i64: 16, 64>}]} {
    %c0 = arith.constant 0 : index
    %c0_0 = arith.constant 0 : index
    %0 = vector.load %arg2[%c0, %c0_0] : memref<16x32xbf16, #tpu.memory_space<vmem>>, vector<16x32xbf16>
    %c0_1 = arith.constant 0 : index
    %c0_2 = arith.constant 0 : index
    %1 = vector.load %arg3[%c0_1, %c0_2] : memref<32x64xbf16, #tpu.memory_space<vmem>>, vector<32x64xbf16>
    %cst = arith.constant dense<0.000000e+00> : vector<16x64xf32>
    %2 = tpu.matmul %0, %1, %cst {dimension_numbers = #tpu.dot_dimension_numbers<[1], [0], [0], [1], [0, 0, 1, 1], [], []>} : vector<16x32xbf16>, vector<32x64xbf16>, vector<16x64xf32> -> vector<16x64xf32>
    %c0_3 = arith.constant 0 : index
    %c0_4 = arith.constant 0 : index
    %3 = vector.load %arg4[%c0_3, %c0_4] : memref<1x64xf32, #tpu.memory_space<vmem>>, vector<1x64xf32>
    %4 = vector.broadcast %3 : vector<1x64xf32> to vector<16x64xf32>
    %5 = arith.addf %2, %4 : vector<16x64xf32>
    %c0_5 = arith.constant 0 : index
    %c0_6 = arith.constant 0 : index
    %6 = vector.load %arg5[%c0_5, %c0_6] : memref<16x64xf32, #tpu.memory_space<vmem>>, vector<16x64xf32>
    tpu.vector_store %arg5[%c0_5, %c0_6], %5 {strides = array<i32>} : memref<16x64xf32, #tpu.memory_space<vmem>>, vector<16x64xf32>,
    return
  }
  func.func @transform_0(%arg0: i32, %arg1: i32) -> (i32, i32) {
    %c0_i32 = arith.constant 0 : i32
    %c0_i32_0 = arith.constant 0 : i32
    return %arg0, %c0_i32 : i32, i32
  }
  func.func @transform_1(%arg0: i32, %arg1: i32) -> (i32, i32) {
    %c0_i32 = arith.constant 0 : i32
    %c0_i32_0 = arith.constant 0 : i32
    return %c0_i32, %arg1 : i32, i32
  }
  func.func @transform_2(%arg0: i32, %arg1: i32) -> (i32, i32) {
    %c0_i32 = arith.constant 0 : i32
    %c0_i32_0 = arith.constant 0 : i32
    return %c0_i32, %arg1 : i32, i32
  }
  func.func @transform_3(%arg0: i32, %arg1: i32) -> (i32, i32) {
    %c0_i32 = arith.constant 0 : i32
    return %arg0, %arg1 : i32, i32
  }
}

</mosaic_0001>

<llo_original>
// kernel: tpu_custom_call.1
$region0: #{tpu_custom_call.1}
  #allocation0 [shape = 'u32[]', space=smem, size = 0x4, offset = 0x4, fixed_abs, tag = 'smem constant byte address 0x4 - core index']
  #allocation1 [shape = 'u32[72,128]{1,0:T(1,128)}', space=vmem, size = 0x9000, scoped, tag = 'internal scratch']
  %s0 = inlined_call_operand.hbm [shape: bf16[16,32], index: 0, kind: input, shape index: {}]
  %s1 = inlined_call_operand.hbm [shape: bf16[32,64], index: 1, kind: input, shape index: {}]
  %s2 = inlined_call_operand.vmem [shape: f32[1,64], index: 2, kind: input, shape index: {}]
  %s3 = inlined_call_operand.hbm [shape: f32[16,64], index: 3, kind: output, shape index: {}]
  %s4 = sld [smem:[#allocation0]]
  $region30: #{tpu_custom_call.1} parent=0
    _
  %s6 = ssub.s32 1, %s4
  %s7 = scalar_select 0, %s6, %s4
  $region1: #{tpu_custom_call.1} parent=0
    #allocation2 [shape = 'u8[4096]{0}', space=vmem, size = 0x1000, scoped, tag = 'input window, operand 0, single buffered']
    #allocation3 [shape = 's32[1]{0}', space=sflag, size = 0x4, scoped, tag = 'scoped memory for tpu_custom_call.1']
    #allocation4 [shape = 's32[1]{0}', space=sflag, size = 0x4, scoped, tag = 'scoped memory for tpu_custom_call.1']
    #allocation5 [shape = 'u8[8192]{0}', space=vmem, size = 0x2000, scoped, tag = 'input window, operand 1, single buffered']
    #allocation6 [shape = 's32[1]{0}', space=sflag, size = 0x4, scoped, tag = 'scoped memory for tpu_custom_call.1']
    #allocation7 [shape = 'u8[8192]{0}', space=vmem, size = 0x2000, scoped, tag = 'output window, operand 0, single buffered']
    %8 = vsyncpa [#allocation3], 0
    %9 = vsyncpa [#allocation6], 0
    %10 = vsyncpa [#allocation4], 0
    // Predicated region
    $region2: #{tpu_custom_call.1} parent=1 // pred_check
      _
    $region3: #{tpu_custom_call.1} parent=1 // pred_check_branch
      %12 = sbr.rel (0) target = $region5
    $region4: #{tpu_custom_call.1} parent=1 // pred_region
      %14 = vsyncadd [#allocation3], 0
      %s15 = sshll.u32 %s0, 4
      %s16 = int_to_ptr.hbm [resolvable:$true] %s15
      %s17 = sshll.u32 [#allocation2], 4
      %s18 = int_to_ptr.vmem [resolvable:$true] %s17
      %23 = dma.hbm_to_vmem [thread:$0]  %s16, 128, %s18, [#allocation3], 64, 64, 4
    $region5: #{tpu_custom_call.1} parent=1 // pred_fallthru
      _
    // Predicated region
    $region6: #{tpu_custom_call.1} parent=1 // pred_check
      _
    $region7: #{tpu_custom_call.1} parent=1 // pred_check_branch
      %25 = sbr.rel (0) target = $region9
    $region8: #{tpu_custom_call.1} parent=1 // pred_region
      %27 = vsyncadd [#allocation6], 0
      %s28 = sshll.u32 %s1, 4
      %s29 = int_to_ptr.hbm [resolvable:$true] %s28
      %s30 = sshll.u32 [#allocation5], 4
      %s31 = int_to_ptr.vmem [resolvable:$true] %s30
      %36 = dma.hbm_to_vmem [thread:$0]  %s29, 256, %s31, [#allocation6], 64, 64, 4
    $region9: #{tpu_custom_call.1} parent=1 // pred_fallthru
      _
    // Predicated region
    $region10: #{tpu_custom_call.1} parent=1 // pred_check
      _
    $region11: #{tpu_custom_call.1} parent=1 // pred_check_branch
      %38 = sbr.rel (0) target = $region13
    $region12: #{tpu_custom_call.1} parent=1 // pred_region
      _
    $region13: #{tpu_custom_call.1} parent=1 // pred_fallthru
      _
    // Predicated region
    $region14: #{tpu_custom_call.1} parent=1 // pred_check
      _
    $region15: #{tpu_custom_call.1} parent=1 // pred_check_branch
      %40 = sbr.rel (0) target = $region17
    $region16: #{tpu_custom_call.1} parent=1 // pred_region
      %42 = dma.done [#allocation3], 128
    $region17: #{tpu_custom_call.1} parent=1 // pred_fallthru
      _
    // Predicated region
    $region18: #{tpu_custom_call.1} parent=1 // pred_check
      _
    $region19: #{tpu_custom_call.1} parent=1 // pred_check_branch
      %44 = sbr.rel (0) target = $region21
    $region20: #{tpu_custom_call.1} parent=1 // pred_region
      %46 = dma.done [#allocation6], 256
    $region21: #{tpu_custom_call.1} parent=1 // pred_fallthru
      _
    %v48 = vld [vmem:[#allocation2] sm:$0xf]
    %v49 = vld [vmem:[#allocation2 + $0x4] sm:$0xf]
    %v50 = vld [vmem:[#allocation5] sm:$0xf]
    %v51 = vld [vmem:[#allocation5 + $0x4] sm:$0xf]
    %v52 = vld [vmem:[#allocation5 + $0x8] sm:$0xf]
    %v53 = vld [vmem:[#allocation5 + $0xc] sm:$0xf]
    %v54 = vld [vmem:[%s2] sm:$0x1]
    %v56 = vperm.slane %v54, 0
    %v60 = vunpack.c.l.b16 %v48
    %v61 = vunpack.c.l.b16 %v49
    %v62 = vpack.c.b16 %v61, %v60
    %v67 = vunpack.c.l.b16 %v50
    %v68 = vunpack.c.l.b16 %v51
    %v69 = vunpack.c.l.b16 %v52
    %v70 = vunpack.c.l.b16 %v53
    %v71 = vpack.c.b16 %v68, %v67
    %v72 = vpack.c.b16 %v70, %v69
    %vm75 = vcmask 261120
    %v77 = vsel %vm75, %v62, 0
    %79 = vmatpush.bf16.msra.mxu0 0
    %80 = vmatpush.bf16.msra.mxu0 0
    %81 = vmatpush.bf16.msra.mxu0 0
    %82 = vmatpush.bf16.msra.mxu0 0
    %83 = vmatpush.bf16.msra.mxu0 0
    %84 = vmatpush.bf16.msra.mxu0 0
    %85 = vmatpush.bf16.msra.mxu0 %v72
    %86 = vmatpush.bf16.msra.mxu0 %v71
    %87 = vmatmul.bf16.gmra.mxu0 %v77
    %v88 = vpop.f32.mrf.mxu0
    %v89 = vadd.f32 %v56, %v88
    %v90 = vpop.f32.mrf.mxu0
    %v91 = vadd.f32 %v56, %v90
    %92 = vdwg.mxu0
    %vm93 = vcmask 523264
    %94 = vst.msk [vmem:[#allocation7] sm:$0xff] %vm93, %v89
    %95 = vst.msk [vmem:[#allocation7 + $0x8] sm:$0xff] %vm93, %v91
    // Predicated region
    $region22: #{tpu_custom_call.1} parent=1 // pred_check
      _
    $region23: #{tpu_custom_call.1} parent=1 // pred_check_branch
      %97 = sbr.rel (0) target = $region25
    $region24: #{tpu_custom_call.1} parent=1 // pred_region
      %99 = vsyncadd [#allocation4], 0
      %s100 = sshll.u32 [#allocation7], 4
      %s101 = int_to_ptr.vmem [resolvable:$true] %s100
      %s102 = sshll.u32 %s3, 4
      %s103 = int_to_ptr.hbm [resolvable:$true] %s102
      %108 = dma.vmem_to_hbm [thread:$0]  %s101, 256, %s103, [#allocation4], 128, 128, 8
    $region25: #{tpu_custom_call.1} parent=1 // pred_fallthru
      _
    // Predicated region
    $region26: #{tpu_custom_call.1} parent=1 // pred_check
      _
    $region27: #{tpu_custom_call.1} parent=1 // pred_check_branch
      %110 = sbr.rel (0) target = $region29
    $region28: #{tpu_custom_call.1} parent=1 // pred_region
      %112 = dma.done [#allocation4], 256
    $region29: #{tpu_custom_call.1} parent=1 // pred_fallthru
      _
    %113 = vsyncpa [#allocation3], 1
    %114 = vsyncpa [#allocation6], 1
    %115 = vsyncpa [#allocation4], 1

</llo_original>
